<compile_context>
chip_gen: v7x
topology: tpu7x:2x2x1
jax: 0.10.0
libtpu: 0.0.40
codegen_flags: <defaults>
</compile_context>

<pallas_src>
import functools

import jax
import jax.numpy as jnp
from jax.experimental import pallas as pl
from jax.experimental.pallas import tpu as pltpu


def _round_up(n, m):
    return (n + m - 1) // m * m


def _sequential_mlp_kernel(x_ref, w1_ref, b1_ref, w2_ref, b2_ref, o_ref):
    """Fused forward for one batch tile: tanh(relu(x @ W1 + b1) @ W2 + b2)."""
    # Layer 0: Linear(D_in, D_h)   (MXU, f32 accumulate)
    h = jnp.dot(x_ref[...], w1_ref[...], preferred_element_type=jnp.float32)
    h = h + b1_ref[...]                  # (TB, D_h) + (1, D_h) broadcast, f32
    # Layer 1: ReLU                (VPU, f32)
    h = jnp.maximum(h, 0.0)
    # Layer 2: Linear(D_h, D_out)  (MXU; h re-cast to the weight dtype)
    y = jnp.dot(h.astype(w2_ref.dtype), w2_ref[...],
                preferred_element_type=jnp.float32)
    y = y + b2_ref[...]
    # Layer 3: Tanh                (EUP, f32)
    o_ref[...] = jnp.tanh(y).astype(o_ref.dtype)


@functools.partial(jax.jit, static_argnames=("tile_b", "use_bf16_matmul"))
def sequential_forward(x, w1, b1, w2, b2, *, tile_b=512, use_bf16_matmul=True):
    """Batch-tiled fused Sequential(Linear, ReLU, Linear, Tanh) forward.

    x : (B, D_in)    w1 : (D_in, D_h)   b1 : (1, D_h)
                     w2 : (D_h, D_out)  b2 : (1, D_out)
    """
    batch, d_in = x.shape
    d_h = w1.shape[1]
    d_out = w2.shape[1]
    out_dtype = x.dtype

    if use_bf16_matmul:
        # bf16 operands into the MXU; accumulation and the bias/ReLU/tanh
        # epilogue stay f32 (biases are left in f32 on purpose).
        x = x.astype(jnp.bfloat16)
        w1 = w1.astype(jnp.bfloat16)
        w2 = w2.astype(jnp.bfloat16)

    # Batch tile: as large as possible (amortize ~0.35 us per grid step),
    # a multiple of 8 sublanes, collapsed to a single step for tiny batches.
    tb = min(tile_b, _round_up(batch, 8))
    tb = max(8, _round_up(tb, 8))

    def vmem_footprint(tb_):
        # Worst case: the pipeline double-buffers every operand, including the
        # constant-index weight/bias blocks.
        return 2 * (tb_ * d_in * x.dtype.itemsize
                    + tb_ * d_out * jnp.dtype(out_dtype).itemsize
                    + d_in * d_h * w1.dtype.itemsize
                    + d_h * d_out * w2.dtype.itemsize
                    + (d_h + d_out) * b1.dtype.itemsize)

    vmem_budget = 48 * 1024 * 1024       # headroom under v7x's 64 MiB physical
    while vmem_footprint(tb) > vmem_budget and tb > 8:
        tb = max(8, _round_up(tb // 2, 8))

    # Ragged last block is clipped by Pallas (no jnp.pad / output slice).
    grid = (pl.cdiv(batch, tb),)

    compiler_kwargs = dict(dimension_semantics=("parallel",))  # megacore split
    est = vmem_footprint(tb)
    if est > 16 * 1024 * 1024:           # v5e's default scoped-VMEM limit
        compiler_kwargs["vmem_limit_bytes"] = min(int(1.25 * est),
                                                  64 * 1024 * 1024)

    cost = pl.CostEstimate(
        flops=2 * batch * (d_in * d_h + d_h * d_out),
        transcendentals=batch * d_out,
        bytes_accessed=(batch * d_in * x.dtype.itemsize
                        + batch * d_out * jnp.dtype(out_dtype).itemsize
                        + d_in * d_h * w1.dtype.itemsize
                        + d_h * d_out * w2.dtype.itemsize
                        + (d_h + d_out) * b1.dtype.itemsize),
    )

    return pl.pallas_call(
        _sequential_mlp_kernel,
        out_shape=jax.ShapeDtypeStruct((batch, d_out), out_dtype),
        grid_spec=pl.GridSpec(
            grid=grid,
            in_specs=[
                # Activation tile: streams along the batch grid axis.
                pl.BlockSpec((tb, d_in), lambda i: (i, 0)),
                # Weights / biases: constant block -> VMEM-resident.
                pl.BlockSpec((d_in, d_h), lambda i: (0, 0)),
                pl.BlockSpec((1, d_h), lambda i: (0, 0)),
                pl.BlockSpec((d_h, d_out), lambda i: (0, 0)),
                pl.BlockSpec((1, d_out), lambda i: (0, 0)),
            ],
            out_specs=pl.BlockSpec((tb, d_out), lambda i: (i, 0)),
        ),
        compiler_params=pltpu.CompilerParams(**compiler_kwargs),
        cost_estimate=cost,
    )(x, w1, b1, w2, b2)


def _reference(x, w1, b1, w2, b2):
    h = jnp.maximum(
        jnp.dot(x, w1, preferred_element_type=jnp.float32) + b1, 0.0)
    return jnp.tanh(jnp.dot(h, w2, preferred_element_type=jnp.float32) + b2)


if __name__ == "__main__":
    # Lane-dense, MXU-friendly shapes: feature dims multiples of 128.
    B, D_IN, D_H, D_OUT = 256, 128, 256, 128

    key = jax.random.PRNGKey(0)
    k_x, k_w1, k_b1, k_w2, k_b2 = jax.random.split(key, 5)

    x = jax.random.normal(k_x, (B, D_IN), dtype=jnp.float32)
    # PyTorch-Linear-style uniform fan-in init.
    bound1 = 1.0 / jnp.sqrt(D_IN)
    bound2 = 1.0 / jnp.sqrt(D_H)
    w1 = jax.random.uniform(k_w1, (D_IN, D_H), jnp.float32, -bound1, bound1)
    b1 = jax.random.uniform(k_b1, (1, D_H), jnp.float32, -bound1, bound1)
    w2 = jax.random.uniform(k_w2, (D_H, D_OUT), jnp.float32, -bound2, bound2)
    b2 = jax.random.uniform(k_b2, (1, D_OUT), jnp.float32, -bound2, bound2)

    ref = _reference(x, w1, b1, w2, b2)

    # Default path: bf16 MXU inputs, f32 accumulation + epilogue.
    out = sequential_forward(x, w1, b1, w2, b2)
    out = jax.block_until_ready(out)
    assert out.shape == (B, D_OUT)
    assert out.dtype == x.dtype
    assert jnp.allclose(out, ref, atol=5e-2, rtol=5e-2)

    # Bit-tight f32 path.
    out_f32 = sequential_forward(x, w1, b1, w2, b2, use_bf16_matmul=False)
    out_f32 = jax.block_until_ready(out_f32)
    assert jnp.allclose(out_f32, ref, atol=1e-4, rtol=1e-4)

    # Ragged batch (B % tile != 0): exercises the Pallas-clipped partial block
    # path that replaced the wrapper-side jnp.pad.
    B_R = 200
    out_r = sequential_forward(x[:B_R], w1, b1, w2, b2,
                               tile_b=128, use_bf16_matmul=False)
    out_r = jax.block_until_ready(out_r)
    assert out_r.shape == (B_R, D_OUT)
    assert jnp.allclose(out_r, ref[:B_R], atol=1e-4, rtol=1e-4)

    # TODO(synk): Sequential.backward / param() (training bookkeeping, x.clone)
    # have no forward-pass Pallas equivalent and are intentionally not modeled.
    print("KERNEL_OK")
</pallas_src>

<mosaic_0001>
module attributes {stable_mosaic.version = 11 : i64} {
  func.func @_sequential_mlp_kernel(%arg0: i32, %arg1: memref<256x128xbf16, #tpu.memory_space<vmem>>, %arg2: memref<128x256xbf16, #tpu.memory_space<vmem>>, %arg3: memref<1x256xf32, #tpu.memory_space<vmem>>, %arg4: memref<256x128xbf16, #tpu.memory_space<vmem>>, %arg5: memref<1x128xf32, #tpu.memory_space<vmem>>, %arg6: memref<256x128xf32, #tpu.memory_space<vmem>>) attributes {dimension_semantics = [#tpu.dimension_semantics<parallel>], iteration_bounds = array<i64: 1>, scalar_prefetch = 0 : i64, scratch_operands = 0 : i64, tpu.core_type = #tpu.core_type<tc>, window_params = [{transform_indices = @transform_0, window_bounds = array<i64: 256, 128>}, {pipeline_mode = #tpu.pipeline_mode<synchronous>, transform_indices = @transform_1, window_bounds = array<i64: 128, 256>}, {pipeline_mode = #tpu.pipeline_mode<synchronous>, transform_indices = @transform_2, window_bounds = array<i64: 1, 256>}, {pipeline_mode = #tpu.pipeline_mode<synchronous>, transform_indices = @transform_3, window_bounds = array<i64: 256, 128>}, {pipeline_mode = #tpu.pipeline_mode<synchronous>, transform_indices = @transform_4, window_bounds = array<i64: 1, 128>}, {transform_indices = @transform_5, window_bounds = array<i64: 256, 128>}]} {
    %c0 = arith.constant 0 : index
    %c0_0 = arith.constant 0 : index
    %0 = vector.load %arg1[%c0, %c0_0] : memref<256x128xbf16, #tpu.memory_space<vmem>>, vector<256x128xbf16>
    %c0_1 = arith.constant 0 : index
    %c0_2 = arith.constant 0 : index
    %1 = vector.load %arg2[%c0_1, %c0_2] : memref<128x256xbf16, #tpu.memory_space<vmem>>, vector<128x256xbf16>
    %cst = arith.constant dense<0.000000e+00> : vector<256x256xf32>
    %2 = tpu.matmul %0, %1, %cst {dimension_numbers = #tpu.dot_dimension_numbers<[1], [0], [0], [1], [0, 0, 1, 1], [], []>} : vector<256x128xbf16>, vector<128x256xbf16>, vector<256x256xf32> -> vector<256x256xf32>
    %c0_3 = arith.constant 0 : index
    %c0_4 = arith.constant 0 : index
    %3 = vector.load %arg3[%c0_3, %c0_4] : memref<1x256xf32, #tpu.memory_space<vmem>>, vector<1x256xf32>
    %4 = vector.broadcast %3 : vector<1x256xf32> to vector<256x256xf32>
    %5 = arith.addf %2, %4 : vector<256x256xf32>
    %cst_5 = arith.constant 0.000000e+00 : f32
    %6 = vector.broadcast %cst_5 : f32 to vector<256x256xf32>
    %7 = arith.maximumf %5, %6 : vector<256x256xf32>
    %8 = arith.truncf %7 : vector<256x256xf32> to vector<256x256xbf16>
    %c0_6 = arith.constant 0 : index
    %c0_7 = arith.constant 0 : index
    %9 = vector.load %arg4[%c0_6, %c0_7] : memref<256x128xbf16, #tpu.memory_space<vmem>>, vector<256x128xbf16>
    %cst_8 = arith.constant dense<0.000000e+00> : vector<256x128xf32>
    %10 = tpu.matmul %8, %9, %cst_8 {dimension_numbers = #tpu.dot_dimension_numbers<[1], [0], [0], [1], [0, 0, 1, 1], [], []>} : vector<256x256xbf16>, vector<256x128xbf16>, vector<256x128xf32> -> vector<256x128xf32>
    %c0_9 = arith.constant 0 : index
    %c0_10 = arith.constant 0 : index
    %11 = vector.load %arg5[%c0_9, %c0_10] : memref<1x128xf32, #tpu.memory_space<vmem>>, vector<1x128xf32>
    %12 = vector.broadcast %11 : vector<1x128xf32> to vector<256x128xf32>
    %13 = arith.addf %10, %12 : vector<256x128xf32>
    %14 = math.tanh %13 : vector<256x128xf32>
    %c0_11 = arith.constant 0 : index
    %c0_12 = arith.constant 0 : index
    %15 = vector.load %arg6[%c0_11, %c0_12] : memref<256x128xf32, #tpu.memory_space<vmem>>, vector<256x128xf32>
    tpu.vector_store %arg6[%c0_11, %c0_12], %14 {strides = array<i32>} : memref<256x128xf32, #tpu.memory_space<vmem>>, vector<256x128xf32>,
    return
  }
  func.func @transform_0(%arg0: i32) -> (i32, i32) {
    %c0_i32 = arith.constant 0 : i32
    %c0_i32_0 = arith.constant 0 : i32
    return %arg0, %c0_i32 : i32, i32
  }
  func.func @transform_1(%arg0: i32) -> (i32, i32) {
    %c0_i32 = arith.constant 0 : i32
    %c0_i32_0 = arith.constant 0 : i32
    %c0_i32_1 = arith.constant 0 : i32
    return %c0_i32, %c0_i32_0 : i32, i32
  }
  func.func @transform_2(%arg0: i32) -> (i32, i32) {
    %c0_i32 = arith.constant 0 : i32
    %c0_i32_0 = arith.constant 0 : i32
    %c0_i32_1 = arith.constant 0 : i32
    return %c0_i32, %c0_i32_0 : i32, i32
  }
  func.func @transform_3(%arg0: i32) -> (i32, i32) {
    %c0_i32 = arith.constant 0 : i32
    %c0_i32_0 = arith.constant 0 : i32
    %c0_i32_1 = arith.constant 0 : i32
    return %c0_i32, %c0_i32_0 : i32, i32
  }
  func.func @transform_4(%arg0: i32) -> (i32, i32) {
    %c0_i32 = arith.constant 0 : i32
    %c0_i32_0 = arith.constant 0 : i32
    %c0_i32_1 = arith.constant 0 : i32
    return %c0_i32, %c0_i32_0 : i32, i32
  }
  func.func @transform_5(%arg0: i32) -> (i32, i32) {
    %c0_i32 = arith.constant 0 : i32
    %c0_i32_0 = arith.constant 0 : i32
    return %arg0, %c0_i32 : i32, i32
  }
}

</mosaic_0001>

<llo_original>
// kernel: sequential_forward.1
$region0: #{sequential_forward.1}
  #allocation0 [shape = 'u32[]', space=smem, size = 0x4, offset = 0x4, fixed_abs, tag = 'smem constant byte address 0x4 - core index']
  #allocation1 [shape = 'u32[144,128]{1,0:T(1,128)}', space=vmem, size = 0x12000, scoped, tag = 'internal scratch']
  %s0 = inlined_call_operand.vmem [shape: bf16[256,128], index: 0, kind: input, shape index: {}]
  %s1 = inlined_call_operand.vmem [shape: bf16[128,256], index: 1, kind: input, shape index: {}]
  %s2 = inlined_call_operand.vmem [shape: f32[1,256], index: 2, kind: input, shape index: {}]
  %s3 = inlined_call_operand.vmem [shape: bf16[256,128], index: 3, kind: input, shape index: {}]
  %s4 = inlined_call_operand.vmem [shape: f32[1,128], index: 4, kind: input, shape index: {}]
  %s5 = inlined_call_operand.hbm [shape: f32[256,128], index: 5, kind: output, shape index: {}]
  %s6 = sld [smem:[#allocation0]]
  $region30: #{sequential_forward.1} parent=0
    _
  %s8 = ssub.s32 1, %s6
  %s9 = scalar_select 0, %s8, %s6
  $region1: #{sequential_forward.1} parent=0
    #allocation2 [shape = 'u8[131072]{0}', space=vmem, size = 0x20000, scoped, tag = 'output window, operand 0, single buffered']
    #allocation3 [shape = 's32[1]{0}', space=sflag, size = 0x4, scoped, tag = 'scoped memory for sequential_forward.1']
    %10 = vsyncpa [#allocation3], 0
    // Predicated region
    $region2: #{sequential_forward.1} parent=1 // pred_check
      _
    $region3: #{sequential_forward.1} parent=1 // pred_check_branch
      %12 = sbr.rel (0) target = $region5
    $region4: #{sequential_forward.1} parent=1 // pred_region
      _
    $region5: #{sequential_forward.1} parent=1 // pred_fallthru
      _
    // Predicated region
    $region6: #{sequential_forward.1} parent=1 // pred_check
      _
    $region7: #{sequential_forward.1} parent=1 // pred_check_branch
      %14 = sbr.rel (0) target = $region9
    $region8: #{sequential_forward.1} parent=1 // pred_region
      _
    $region9: #{sequential_forward.1} parent=1 // pred_fallthru
      _
    // Predicated region
    $region10: #{sequential_forward.1} parent=1 // pred_check
      _
    $region11: #{sequential_forward.1} parent=1 // pred_check_branch
      %16 = sbr.rel (0) target = $region13
    $region12: #{sequential_forward.1} parent=1 // pred_region
      _
    $region13: #{sequential_forward.1} parent=1 // pred_fallthru
      _
    // Predicated region
    $region14: #{sequential_forward.1} parent=1 // pred_check
      _
    $region15: #{sequential_forward.1} parent=1 // pred_check_branch
      %18 = sbr.rel (0) target = $region17
    $region16: #{sequential_forward.1} parent=1 // pred_region
      _
    $region17: #{sequential_forward.1} parent=1 // pred_fallthru
      _
    // Predicated region
    $region18: #{sequential_forward.1} parent=1 // pred_check
      _
    $region19: #{sequential_forward.1} parent=1 // pred_check_branch
      %20 = sbr.rel (0) target = $region21
    $region20: #{sequential_forward.1} parent=1 // pred_region
      _
    $region21: #{sequential_forward.1} parent=1 // pred_fallthru
      _
    %v22 = vld [vmem:[%s0] sm:$0xf]
    %v23 = vld [vmem:[%s0 + $0x4] sm:$0xf]
    %v24 = vld [vmem:[%s0 + $0x8] sm:$0xf]
    %v25 = vld [vmem:[%s0 + $0xc] sm:$0xf]
    %v26 = vld [vmem:[%s0 + $0x10] sm:$0xf]
    %v27 = vld [vmem:[%s0 + $0x14] sm:$0xf]
    %v28 = vld [vmem:[%s0 + $0x18] sm:$0xf]
    %v29 = vld [vmem:[%s0 + $0x1c] sm:$0xf]
    %v30 = vld [vmem:[%s0 + $0x20] sm:$0xf]
    %v31 = vld [vmem:[%s0 + $0x24] sm:$0xf]
    %v32 = vld [vmem:[%s0 + $0x28] sm:$0xf]
    %v33 = vld [vmem:[%s0 + $0x2c] sm:$0xf]
    %v34 = vld [vmem:[%s0 + $0x30] sm:$0xf]
    %v35 = vld [vmem:[%s0 + $0x34] sm:$0xf]
    %v36 = vld [vmem:[%s0 + $0x38] sm:$0xf]
    %v37 = vld [vmem:[%s0 + $0x3c] sm:$0xf]
    %v38 = vld [vmem:[%s0 + $0x40] sm:$0xf]
    %v39 = vld [vmem:[%s0 + $0x44] sm:$0xf]
    %v40 = vld [vmem:[%s0 + $0x48] sm:$0xf]
    %v41 = vld [vmem:[%s0 + $0x4c] sm:$0xf]
    %v42 = vld [vmem:[%s0 + $0x50] sm:$0xf]
    %v43 = vld [vmem:[%s0 + $0x54] sm:$0xf]
    %v44 = vld [vmem:[%s0 + $0x58] sm:$0xf]
    %v45 = vld [vmem:[%s0 + $0x5c] sm:$0xf]
    %v46 = vld [vmem:[%s0 + $0x60] sm:$0xf]
    %v47 = vld [vmem:[%s0 + $0x64] sm:$0xf]
    %v48 = vld [vmem:[%s0 + $0x68] sm:$0xf]
    %v49 = vld [vmem:[%s0 + $0x6c] sm:$0xf]
    %v50 = vld [vmem:[%s0 + $0x70] sm:$0xf]
    %v51 = vld [vmem:[%s0 + $0x74] sm:$0xf]
    %v52 = vld [vmem:[%s0 + $0x78] sm:$0xf]
    %v53 = vld [vmem:[%s0 + $0x7c] sm:$0xf]
    %v54 = vld [vmem:[%s1] sm:$0xff]
    %v55 = vld [vmem:[%s1 + $0x8] sm:$0xff]
    %v56 = vld [vmem:[%s1 + $0x10] sm:$0xff]
    %v57 = vld [vmem:[%s1 + $0x18] sm:$0xff]
    %v58 = vld [vmem:[%s1 + $0x20] sm:$0xff]
    %v59 = vld [vmem:[%s1 + $0x28] sm:$0xff]
    %v60 = vld [vmem:[%s1 + $0x30] sm:$0xff]
    %v61 = vld [vmem:[%s1 + $0x38] sm:$0xff]
    %v62 = vld [vmem:[%s1 + $0x40] sm:$0xff]
    %v63 = vld [vmem:[%s1 + $0x48] sm:$0xff]
    %v64 = vld [vmem:[%s1 + $0x50] sm:$0xff]
    %v65 = vld [vmem:[%s1 + $0x58] sm:$0xff]
    %v66 = vld [vmem:[%s1 + $0x60] sm:$0xff]
    %v67 = vld [vmem:[%s1 + $0x68] sm:$0xff]
    %v68 = vld [vmem:[%s1 + $0x70] sm:$0xff]
    %v69 = vld [vmem:[%s1 + $0x78] sm:$0xff]
    %v70 = vld [vmem:[%s2] sm:$0x3]
    %v72 = vlaneseq
    %v73 = vshrl.u32 %v72, 7
    %v74 = vsub.s32 0, %v73
    %v75 = vrot.slane %v70, %v74
    %v76 = vlaneseq
    %v77 = vshrl.u32 %v76, 7
    %v78 = vsub.s32 1, %v77
    %v79 = vrot.slane %v70, %v78
    %v114 = vunpack.c.l.b16 %v22
    %v115 = vunpack.c.l.b16 %v23
    %v116 = vunpack.c.l.b16 %v24
    %v117 = vunpack.c.l.b16 %v25
    %v118 = vunpack.c.l.b16 %v26
    %v119 = vunpack.c.l.b16 %v27
    %v120 = vunpack.c.l.b16 %v28
    %v121 = vunpack.c.l.b16 %v29
    %v122 = vunpack.c.l.b16 %v30
    %v123 = vunpack.c.l.b16 %v31
    %v124 = vunpack.c.l.b16 %v32
    %v125 = vunpack.c.l.b16 %v33
    %v126 = vunpack.c.l.b16 %v34
    %v127 = vunpack.c.l.b16 %v35
    %v128 = vunpack.c.l.b16 %v36
    %v129 = vunpack.c.l.b16 %v37
    %v130 = vunpack.c.l.b16 %v38
    %v131 = vunpack.c.l.b16 %v39
    %v132 = vunpack.c.l.b16 %v40
    %v133 = vunpack.c.l.b16 %v41
    %v134 = vunpack.c.l.b16 %v42
    %v135 = vunpack.c.l.b16 %v43
    %v136 = vunpack.c.l.b16 %v44
    %v137 = vunpack.c.l.b16 %v45
    %v138 = vunpack.c.l.b16 %v46
    %v139 = vunpack.c.l.b16 %v47
    %v140 = vunpack.c.l.b16 %v48
    %v141 = vunpack.c.l.b16 %v49
    %v142 = vunpack.c.l.b16 %v50
    %v143 = vunpack.c.l.b16 %v51
    %v144 = vunpack.c.l.b16 %v52
    %v145 = vunpack.c.l.b16 %v53
    %v146 = vpack.c.b16 %v115, %v114
    %v147 = vpack.c.b16 %v117, %v116
    %v148 = vpack.c.b16 %v119, %v118
    %v149 = vpack.c.b16 %v121, %v120
    %v150 = vpack.c.b16 %v123, %v122
    %v151 = vpack.c.b16 %v125, %v124
    %v152 = vpack.c.b16 %v127, %v126
    %v153 = vpack.c.b16 %v129, %v128
    %v154 = vpack.c.b16 %v131, %v130
    %v155 = vpack.c.b16 %v133, %v132
    %v156 = vpack.c.b16 %v135, %v134
    %v157 = vpack.c.b16 %v137, %v136
    %v158 = vpack.c.b16 %v139, %v138
    %v159 = vpack.c.b16 %v141, %v140
    %v160 = vpack.c.b16 %v143, %v142
    %v161 = vpack.c.b16 %v145, %v144
    %v194 = vunpack.c.l.b16 %v54
    %v195 = vunpack.c.h.b16 %v54
    %v196 = vunpack.c.l.b16 %v55
    %v197 = vunpack.c.h.b16 %v55
    %v198 = vunpack.c.l.b16 %v56
    %v199 = vunpack.c.h.b16 %v56
    %v200 = vunpack.c.l.b16 %v57
    %v201 = vunpack.c.h.b16 %v57
    %v202 = vunpack.c.l.b16 %v58
    %v203 = vunpack.c.h.b16 %v58
    %v204 = vunpack.c.l.b16 %v59
    %v205 = vunpack.c.h.b16 %v59
    %v206 = vunpack.c.l.b16 %v60
    %v207 = vunpack.c.h.b16 %v60
    %v208 = vunpack.c.l.b16 %v61
    %v209 = vunpack.c.h.b16 %v61
    %v210 = vunpack.c.l.b16 %v62
    %v211 = vunpack.c.h.b16 %v62
    %v212 = vunpack.c.l.b16 %v63
    %v213 = vunpack.c.h.b16 %v63
    %v214 = vunpack.c.l.b16 %v64
    %v215 = vunpack.c.h.b16 %v64
    %v216 = vunpack.c.l.b16 %v65
    %v217 = vunpack.c.h.b16 %v65
    %v218 = vunpack.c.l.b16 %v66
    %v219 = vunpack.c.h.b16 %v66
    %v220 = vunpack.c.l.b16 %v67
    %v221 = vunpack.c.h.b16 %v67
    %v222 = vunpack.c.l.b16 %v68
    %v223 = vunpack.c.h.b16 %v68
    %v224 = vunpack.c.l.b16 %v69
    %v225 = vunpack.c.h.b16 %v69
    %v226 = vpack.c.b16 %v196, %v194
    %v227 = vpack.c.b16 %v197, %v195
    %v228 = vpack.c.b16 %v200, %v198
    %v229 = vpack.c.b16 %v201, %v199
    %v230 = vpack.c.b16 %v204, %v202
    %v231 = vpack.c.b16 %v205, %v203
    %v232 = vpack.c.b16 %v208, %v206
    %v233 = vpack.c.b16 %v209, %v207
    %v234 = vpack.c.b16 %v212, %v210
    %v235 = vpack.c.b16 %v213, %v211
    %v236 = vpack.c.b16 %v216, %v214
    %v237 = vpack.c.b16 %v217, %v215
    %v238 = vpack.c.b16 %v220, %v218
    %v239 = vpack.c.b16 %v221, %v219
    %v240 = vpack.c.b16 %v224, %v222
    %v241 = vpack.c.b16 %v225, %v223
    %258 = vmatprep.subr.bf16.mxu0 %v227
    %259 = vmatpush1.bf16.msra.mxu0 %v226
    %260 = vmatprep.subr.bf16.mxu0 %v229
    %261 = vmatpush1.bf16.msra.mxu0 %v228
    %262 = vmatprep.subr.bf16.mxu0 %v231
    %263 = vmatpush1.bf16.msra.mxu0 %v230
    %264 = vmatprep.subr.bf16.mxu0 %v233
    %265 = vmatpush1.bf16.msra.mxu0 %v232
    %266 = vmatprep.subr.bf16.mxu0 %v235
    %267 = vmatpush1.bf16.msra.mxu0 %v234
    %268 = vmatprep.subr.bf16.mxu0 %v237
    %269 = vmatpush1.bf16.msra.mxu0 %v236
    %270 = vmatprep.subr.bf16.mxu0 %v239
    %271 = vmatpush1.bf16.msra.mxu0 %v238
    %272 = vmatprep.subr.bf16.mxu0 %v241
    %273 = vmatpush1.bf16.msra.mxu0 %v240
    %274 = vmatprep.subr.bf16.mxu0 0
    %275 = vmatpush1.bf16.msra.mxu0 0
    %276 = vmatprep.subr.bf16.mxu0 0
    %277 = vmatpush1.bf16.msra.mxu0 0
    %278 = vmatprep.subr.bf16.mxu0 0
    %279 = vmatpush1.bf16.msra.mxu0 0
    %280 = vmatprep.subr.bf16.mxu0 0
    %281 = vmatpush1.bf16.msra.mxu0 0
    %282 = vmatprep.subr.bf16.mxu0 0
    %283 = vmatpush1.bf16.msra.mxu0 0
    %284 = vmatprep.subr.bf16.mxu0 0
    %285 = vmatpush1.bf16.msra.mxu0 0
    %286 = vmatprep.subr.bf16.mxu0 0
    %287 = vmatpush1.bf16.msra.mxu0 0
    %288 = vmatprep.subr.bf16.mxu0 0
    %289 = vmatpush1.bf16.msra.mxu0 0
    %290 = vmatprep.mubr.bf16.mxu0 0
    %291 = vmatmul.mubr.bf16.gmra.mrb[0].mxu0 %v146
    %v292 = vpop.f32.mrb[0].mxu0
    %v293 = vadd.f32 %v75, %v292
    %v294 = vpop.f32.mrb[0].mxu0
    %v295 = vadd.f32 %v79, %v294
    %v296 = vpop.f32.mrb[0].mxu0
    %v297 = vadd.f32 %v75, %v296
    %v298 = vpop.f32.mrb[0].mxu0
    %v299 = vadd.f32 %v79, %v298
    %300 = vmatprep.mubr.bf16.mxu0 0
    %301 = vmatmul.mubr.bf16.gmra.mrb[0].mxu0 %v147
    %v302 = vpop.f32.mrb[0].mxu0
    %v303 = vadd.f32 %v75, %v302
    %v304 = vpop.f32.mrb[0].mxu0
    %v305 = vadd.f32 %v79, %v304
    %v306 = vpop.f32.mrb[0].mxu0
    %v307 = vadd.f32 %v75, %v306
    %v308 = vpop.f32.mrb[0].mxu0
    %v309 = vadd.f32 %v79, %v308
    %310 = vmatprep.mubr.bf16.mxu0 0
    %311 = vmatmul.mubr.bf16.gmra.mrb[0].mxu0 %v148
    %v312 = vpop.f32.mrb[0].mxu0
    %v313 = vadd.f32 %v75, %v312
    %v314 = vpop.f32.mrb[0].mxu0
    %v315 = vadd.f32 %v79, %v314
    %v316 = vpop.f32.mrb[0].mxu0
    %v317 = vadd.f32 %v75, %v316
    %v318 = vpop.f32.mrb[0].mxu0
    %v319 = vadd.f32 %v79, %v318
    %320 = vmatprep.mubr.bf16.mxu0 0
    %321 = vmatmul.mubr.bf16.gmra.mrb[0].mxu0 %v149
    %v322 = vpop.f32.mrb[0].mxu0
    %v323 = vadd.f32 %v75, %v322
    %v324 = vpop.f32.mrb[0].mxu0
    %v325 = vadd.f32 %v79, %v324
    %v326 = vpop.f32.mrb[0].mxu0
    %v327 = vadd.f32 %v75, %v326
    %v328 = vpop.f32.mrb[0].mxu0
    %v329 = vadd.f32 %v79, %v328
    %330 = vmatprep.mubr.bf16.mxu0 0
    %331 = vmatmul.mubr.bf16.gmra.mrb[0].mxu0 %v150
    %v332 = vpop.f32.mrb[0].mxu0
    %v333 = vadd.f32 %v75, %v332
    %v334 = vpop.f32.mrb[0].mxu0
    %v335 = vadd.f32 %v79, %v334
    %v336 = vpop.f32.mrb[0].mxu0
    %v337 = vadd.f32 %v75, %v336
    %v338 = vpop.f32.mrb[0].mxu0
    %v339 = vadd.f32 %v79, %v338
    %340 = vmatprep.mubr.bf16.mxu0 0
    %341 = vmatmul.mubr.bf16.gmra.mrb[0].mxu0 %v151
    %v342 = vpop.f32.mrb[0].mxu0
    %v343 = vadd.f32 %v75, %v342
    %v344 = vpop.f32.mrb[0].mxu0
    %v345 = vadd.f32 %v79, %v344
    %v346 = vpop.f32.mrb[0].mxu0
    %v347 = vadd.f32 %v75, %v346
    %v348 = vpop.f32.mrb[0].mxu0
    %v349 = vadd.f32 %v79, %v348
    %350 = vmatprep.mubr.bf16.mxu0 0
    %351 = vmatmul.mubr.bf16.gmra.mrb[0].mxu0 %v152
    %v352 = vpop.f32.mrb[0].mxu0
    %v353 = vadd.f32 %v75, %v352
    %v354 = vpop.f32.mrb[0].mxu0
    %v355 = vadd.f32 %v79, %v354
    %v356 = vpop.f32.mrb[0].mxu0
    %v357 = vadd.f32 %v75, %v356
    %v358 = vpop.f32.mrb[0].mxu0
    %v359 = vadd.f32 %v79, %v358
    %360 = vmatprep.mubr.bf16.mxu0 0
    %361 = vmatmul.mubr.bf16.gmra.mrb[0].mxu0 %v153
    %v362 = vpop.f32.mrb[0].mxu0
    %v363 = vadd.f32 %v75, %v362
    %v364 = vpop.f32.mrb[0].mxu0
    %v365 = vadd.f32 %v79, %v364
    %v366 = vpop.f32.mrb[0].mxu0
    %v367 = vadd.f32 %v75, %v366
    %v368 = vpop.f32.mrb[0].mxu0
    %v369 = vadd.f32 %v79, %v368
    %370 = vmatprep.mubr.bf16.mxu0 0
    %371 = vmatmul.mubr.bf16.gmra.mrb[0].mxu0 %v154
    %v372 = vpop.f32.mrb[0].mxu0
    %v373 = vadd.f32 %v75, %v372
    %v374 = vpop.f32.mrb[0].mxu0
    %v375 = vadd.f32 %v79, %v374
    %v376 = vpop.f32.mrb[0].mxu0
    %v377 = vadd.f32 %v75, %v376
    %v378 = vpop.f32.mrb[0].mxu0
    %v379 = vadd.f32 %v79, %v378
    %380 = vmatprep.mubr.bf16.mxu0 0
    %381 = vmatmul.mubr.bf16.gmra.mrb[0].mxu0 %v155
    %v382 = vpop.f32.mrb[0].mxu0
    %v383 = vadd.f32 %v75, %v382
    %v384 = vpop.f32.mrb[0].mxu0
    %v385 = vadd.f32 %v79, %v384
    %v386 = vpop.f32.mrb[0].mxu0
    %v387 = vadd.f32 %v75, %v386
    %v388 = vpop.f32.mrb[0].mxu0
    %v389 = vadd.f32 %v79, %v388
    %390 = vmatprep.mubr.bf16.mxu0 0
    %391 = vmatmul.mubr.bf16.gmra.mrb[0].mxu0 %v156
    %v392 = vpop.f32.mrb[0].mxu0
    %v393 = vadd.f32 %v75, %v392
    %v394 = vpop.f32.mrb[0].mxu0
    %v395 = vadd.f32 %v79, %v394
    %v396 = vpop.f32.mrb[0].mxu0
    %v397 = vadd.f32 %v75, %v396
    %v398 = vpop.f32.mrb[0].mxu0
    %v399 = vadd.f32 %v79, %v398
    %400 = vmatprep.mubr.bf16.mxu0 0
    %401 = vmatmul.mubr.bf16.gmra.mrb[0].mxu0 %v157
    %v402 = vpop.f32.mrb[0].mxu0
    %v403 = vadd.f32 %v75, %v402
    %v404 = vpop.f32.mrb[0].mxu0
    %v405 = vadd.f32 %v79, %v404
    %v406 = vpop.f32.mrb[0].mxu0
    %v407 = vadd.f32 %v75, %v406
    %v408 = vpop.f32.mrb[0].mxu0
    %v409 = vadd.f32 %v79, %v408
    %410 = vmatprep.mubr.bf16.mxu0 0
    %411 = vmatmul.mubr.bf16.gmra.mrb[0].mxu0 %v158
    %v412 = vpop.f32.mrb[0].mxu0
    %v413 = vadd.f32 %v75, %v412
    %v414 = vpop.f32.mrb[0].mxu0
    %v415 = vadd.f32 %v79, %v414
    %v416 = vpop.f32.mrb[0].mxu0
    %v417 = vadd.f32 %v75, %v416
    %v418 = vpop.f32.mrb[0].mxu0
    %v419 = vadd.f32 %v79, %v418
    %420 = vmatprep.mubr.bf16.mxu0 0
    %421 = vmatmul.mubr.bf16.gmra.mrb[0].mxu0 %v159
    %v422 = vpop.f32.mrb[0].mxu0
    %v423 = vadd.f32 %v75, %v422
    %v424 = vpop.f32.mrb[0].mxu0
    %v425 = vadd.f32 %v79, %v424
    %v426 = vpop.f32.mrb[0].mxu0
    %v427 = vadd.f32 %v75, %v426
    %v428 = vpop.f32.mrb[0].mxu0
    %v429 = vadd.f32 %v79, %v428
    %430 = vmatprep.mubr.bf16.mxu0 0
    %431 = vmatmul.mubr.bf16.gmra.mrb[0].mxu0 %v160
    %v432 = vpop.f32.mrb[0].mxu0
    %v433 = vadd.f32 %v75, %v432
    %v434 = vpop.f32.mrb[0].mxu0
    %v435 = vadd.f32 %v79, %v434
    %v436 = vpop.f32.mrb[0].mxu0
    %v437 = vadd.f32 %v75, %v436
    %v438 = vpop.f32.mrb[0].mxu0
    %v439 = vadd.f32 %v79, %v438
    %440 = vmatprep.mubr.bf16.mxu0 0
    %441 = vmatmul.mubr.bf16.gmra.mrb[0].mxu0 %v161
    %v442 = vpop.f32.mrb[0].mxu0
    %v443 = vadd.f32 %v75, %v442
    %v444 = vpop.f32.mrb[0].mxu0
    %v445 = vadd.f32 %v79, %v444
    %v446 = vpop.f32.mrb[0].mxu0
    %v447 = vadd.f32 %v75, %v446
    %v448 = vpop.f32.mrb[0].mxu0
    %v449 = vadd.f32 %v79, %v448
    %450 = vdwg.mxu0
    %v451 = vmax.f32 %v293, 0.0
    %v452 = vmax.f32 %v295, 0.0
    %v453 = vmax.f32 %v297, 0.0
    %v454 = vmax.f32 %v299, 0.0
    %v455 = vmax.f32 %v303, 0.0
    %v456 = vmax.f32 %v305, 0.0
    %v457 = vmax.f32 %v307, 0.0
    %v458 = vmax.f32 %v309, 0.0
    %v459 = vmax.f32 %v313, 0.0
    %v460 = vmax.f32 %v315, 0.0
    %v461 = vmax.f32 %v317, 0.0
    %v462 = vmax.f32 %v319, 0.0
    %v463 = vmax.f32 %v323, 0.0
    %v464 = vmax.f32 %v325, 0.0
    %v465 = vmax.f32 %v327, 0.0
    %v466 = vmax.f32 %v329, 0.0
    %v467 = vmax.f32 %v333, 0.0
    %v468 = vmax.f32 %v335, 0.0
    %v469 = vmax.f32 %v337, 0.0
    %v470 = vmax.f32 %v339, 0.0
    %v471 = vmax.f32 %v343, 0.0
    %v472 = vmax.f32 %v345, 0.0
    %v473 = vmax.f32 %v347, 0.0
    %v474 = vmax.f32 %v349, 0.0
    %v475 = vmax.f32 %v353, 0.0
    %v476 = vmax.f32 %v355, 0.0
    %v477 = vmax.f32 %v357, 0.0
    %v478 = vmax.f32 %v359, 0.0
    %v479 = vmax.f32 %v363, 0.0
    %v480 = vmax.f32 %v365, 0.0
    %v481 = vmax.f32 %v367, 0.0
    %v482 = vmax.f32 %v369, 0.0
    %v483 = vmax.f32 %v373, 0.0
    %v484 = vmax.f32 %v375, 0.0
    %v485 = vmax.f32 %v377, 0.0
    %v486 = vmax.f32 %v379, 0.0
    %v487 = vmax.f32 %v383, 0.0
    %v488 = vmax.f32 %v385, 0.0
    %v489 = vmax.f32 %v387, 0.0
    %v490 = vmax.f32 %v389, 0.0
    %v491 = vmax.f32 %v393, 0.0
    %v492 = vmax.f32 %v395, 0.0
    %v493 = vmax.f32 %v397, 0.0
    %v494 = vmax.f32 %v399, 0.0
    %v495 = vmax.f32 %v403, 0.0
    %v496 = vmax.f32 %v405, 0.0
    %v497 = vmax.f32 %v407, 0.0
    %v498 = vmax.f32 %v409, 0.0
    %v499 = vmax.f32 %v413, 0.0
    %v500 = vmax.f32 %v415, 0.0
    %v501 = vmax.f32 %v417, 0.0
    %v502 = vmax.f32 %v419, 0.0
    %v503 = vmax.f32 %v423, 0.0
    %v504 = vmax.f32 %v425, 0.0
    %v505 = vmax.f32 %v427, 0.0
    %v506 = vmax.f32 %v429, 0.0
    %v507 = vmax.f32 %v433, 0.0
    %v508 = vmax.f32 %v435, 0.0
    %v509 = vmax.f32 %v437, 0.0
    %v510 = vmax.f32 %v439, 0.0
    %v511 = vmax.f32 %v443, 0.0
    %v512 = vmax.f32 %v445, 0.0
    %v513 = vmax.f32 %v447, 0.0
    %v514 = vmax.f32 %v449, 0.0
    %v515 = vpack.c.bf16 %v453, %v451
    %v516 = vpack.c.bf16 %v454, %v452
    %v517 = vpack.c.bf16 %v457, %v455
    %v518 = vpack.c.bf16 %v458, %v456
    %v519 = vpack.c.bf16 %v461, %v459
    %v520 = vpack.c.bf16 %v462, %v460
    %v521 = vpack.c.bf16 %v465, %v463
    %v522 = vpack.c.bf16 %v466, %v464
    %v523 = vpack.c.bf16 %v469, %v467
    %v524 = vpack.c.bf16 %v470, %v468
    %v525 = vpack.c.bf16 %v473, %v471
    %v526 = vpack.c.bf16 %v474, %v472
    %v527 = vpack.c.bf16 %v477, %v475
    %v528 = vpack.c.bf16 %v478, %v476
    %v529 = vpack.c.bf16 %v481, %v479
    %v530 = vpack.c.bf16 %v482, %v480
    %v531 = vpack.c.bf16 %v485, %v483
    %v532 = vpack.c.bf16 %v486, %v484
    %v533 = vpack.c.bf16 %v489, %v487
    %v534 = vpack.c.bf16 %v490, %v488
    %v535 = vpack.c.bf16 %v493, %v491
    %v536 = vpack.c.bf16 %v494, %v492
    %v537 = vpack.c.bf16 %v497, %v495
    %v538 = vpack.c.bf16 %v498, %v496
    %v539 = vpack.c.bf16 %v501, %v499
    %v540 = vpack.c.bf16 %v502, %v500
    %v541 = vpack.c.bf16 %v505, %v503
    %v542 = vpack.c.bf16 %v506, %v504
    %v543 = vpack.c.bf16 %v509, %v507
    %v544 = vpack.c.bf16 %v510, %v508
    %v545 = vpack.c.bf16 %v513, %v511
    %v546 = vpack.c.bf16 %v514, %v512
    %v547 = vld [vmem:[%s3] sm:$0xf]
    %v548 = vld [vmem:[%s3 + $0x4] sm:$0xf]
    %v549 = vld [vmem:[%s3 + $0x8] sm:$0xf]
    %v550 = vld [vmem:[%s3 + $0xc] sm:$0xf]
    %v551 = vld [vmem:[%s3 + $0x10] sm:$0xf]
    %v552 = vld [vmem:[%s3 + $0x14] sm:$0xf]
    %v553 = vld [vmem:[%s3 + $0x18] sm:$0xf]
    %v554 = vld [vmem:[%s3 + $0x1c] sm:$0xf]
    %v555 = vld [vmem:[%s3 + $0x20] sm:$0xf]
    %v556 = vld [vmem:[%s3 + $0x24] sm:$0xf]
    %v557 = vld [vmem:[%s3 + $0x28] sm:$0xf]
    %v558 = vld [vmem:[%s3 + $0x2c] sm:$0xf]
    %v559 = vld [vmem:[%s3 + $0x30] sm:$0xf]
    %v560 = vld [vmem:[%s3 + $0x34] sm:$0xf]
    %v561 = vld [vmem:[%s3 + $0x38] sm:$0xf]
    %v562 = vld [vmem:[%s3 + $0x3c] sm:$0xf]
    %v563 = vld [vmem:[%s3 + $0x40] sm:$0xf]
    %v564 = vld [vmem:[%s3 + $0x44] sm:$0xf]
    %v565 = vld [vmem:[%s3 + $0x48] sm:$0xf]
    %v566 = vld [vmem:[%s3 + $0x4c] sm:$0xf]
    %v567 = vld [vmem:[%s3 + $0x50] sm:$0xf]
    %v568 = vld [vmem:[%s3 + $0x54] sm:$0xf]
    %v569 = vld [vmem:[%s3 + $0x58] sm:$0xf]
    %v570 = vld [vmem:[%s3 + $0x5c] sm:$0xf]
    %v571 = vld [vmem:[%s3 + $0x60] sm:$0xf]
    %v572 = vld [vmem:[%s3 + $0x64] sm:$0xf]
    %v573 = vld [vmem:[%s3 + $0x68] sm:$0xf]
    %v574 = vld [vmem:[%s3 + $0x6c] sm:$0xf]
    %v575 = vld [vmem:[%s3 + $0x70] sm:$0xf]
    %v576 = vld [vmem:[%s3 + $0x74] sm:$0xf]
    %v577 = vld [vmem:[%s3 + $0x78] sm:$0xf]
    %v578 = vld [vmem:[%s3 + $0x7c] sm:$0xf]
    %v579 = vld [vmem:[%s4] sm:$0x1]
    %v581 = vlaneseq
    %v582 = vshrl.u32 %v581, 7
    %v583 = vsub.s32 0, %v582
    %v584 = vrot.slane %v579, %v583
    %v618 = vunpack.c.l.b16 %v547
    %v619 = vunpack.c.l.b16 %v548
    %v620 = vunpack.c.l.b16 %v549
    %v621 = vunpack.c.l.b16 %v550
    %v622 = vunpack.c.l.b16 %v551
    %v623 = vunpack.c.l.b16 %v552
    %v624 = vunpack.c.l.b16 %v553
    %v625 = vunpack.c.l.b16 %v554
    %v626 = vunpack.c.l.b16 %v555
    %v627 = vunpack.c.l.b16 %v556
    %v628 = vunpack.c.l.b16 %v557
    %v629 = vunpack.c.l.b16 %v558
    %v630 = vunpack.c.l.b16 %v559
    %v631 = vunpack.c.l.b16 %v560
    %v632 = vunpack.c.l.b16 %v561
    %v633 = vunpack.c.l.b16 %v562
    %v634 = vunpack.c.l.b16 %v563
    %v635 = vunpack.c.l.b16 %v564
    %v636 = vunpack.c.l.b16 %v565
    %v637 = vunpack.c.l.b16 %v566
    %v638 = vunpack.c.l.b16 %v567
    %v639 = vunpack.c.l.b16 %v568
    %v640 = vunpack.c.l.b16 %v569
    %v641 = vunpack.c.l.b16 %v570
    %v642 = vunpack.c.l.b16 %v571
    %v643 = vunpack.c.l.b16 %v572
    %v644 = vunpack.c.l.b16 %v573
    %v645 = vunpack.c.l.b16 %v574
    %v646 = vunpack.c.l.b16 %v575
    %v647 = vunpack.c.l.b16 %v576
    %v648 = vunpack.c.l.b16 %v577
    %v649 = vunpack.c.l.b16 %v578
    %v650 = vpack.c.b16 %v619, %v618
    %v651 = vpack.c.b16 %v621, %v620
    %v652 = vpack.c.b16 %v623, %v622
    %v653 = vpack.c.b16 %v625, %v624
    %v654 = vpack.c.b16 %v627, %v626
    %v655 = vpack.c.b16 %v629, %v628
    %v656 = vpack.c.b16 %v631, %v630
    %v657 = vpack.c.b16 %v633, %v632
    %v658 = vpack.c.b16 %v635, %v634
    %v659 = vpack.c.b16 %v637, %v636
    %v660 = vpack.c.b16 %v639, %v638
    %v661 = vpack.c.b16 %v641, %v640
    %v662 = vpack.c.b16 %v643, %v642
    %v663 = vpack.c.b16 %v645, %v644
    %v664 = vpack.c.b16 %v647, %v646
    %v665 = vpack.c.b16 %v649, %v648
    %682 = vmatprep.subr.bf16.mxu0 0
    %683 = vmatpush1.bf16.msra.mxu0 %v650
    %684 = vmatprep.subr.bf16.mxu0 0
    %685 = vmatpush1.bf16.msra.mxu0 %v651
    %686 = vmatprep.subr.bf16.mxu0 0
    %687 = vmatpush1.bf16.msra.mxu0 %v652
    %688 = vmatprep.subr.bf16.mxu0 0
    %689 = vmatpush1.bf16.msra.mxu0 %v653
    %690 = vmatprep.subr.bf16.mxu0 0
    %691 = vmatpush1.bf16.msra.mxu0 %v654
    %692 = vmatprep.subr.bf16.mxu0 0
    %693 = vmatpush1.bf16.msra.mxu0 %v655
    %694 = vmatprep.subr.bf16.mxu0 0
    %695 = vmatpush1.bf16.msra.mxu0 %v656
    %696 = vmatprep.subr.bf16.mxu0 0
    %697 = vmatpush1.bf16.msra.mxu0 %v657
    %698 = vmatprep.subr.bf16.mxu0 0
    %699 = vmatpush1.bf16.msra.mxu0 %v658
    %700 = vmatprep.subr.bf16.mxu0 0
    %701 = vmatpush1.bf16.msra.mxu0 %v659
    %702 = vmatprep.subr.bf16.mxu0 0
    %703 = vmatpush1.bf16.msra.mxu0 %v660
    %704 = vmatprep.subr.bf16.mxu0 0
    %705 = vmatpush1.bf16.msra.mxu0 %v661
    %706 = vmatprep.subr.bf16.mxu0 0
    %707 = vmatpush1.bf16.msra.mxu0 %v662
    %708 = vmatprep.subr.bf16.mxu0 0
    %709 = vmatpush1.bf16.msra.mxu0 %v663
    %710 = vmatprep.subr.bf16.mxu0 0
    %711 = vmatpush1.bf16.msra.mxu0 %v664
    %712 = vmatprep.subr.bf16.mxu0 0
    %713 = vmatpush1.bf16.msra.mxu0 %v665
    %714 = vmatprep.mubr.bf16.mxu0 %v516
    %715 = vmatmul.mubr.bf16.gmra.mrb[0].mxu0 %v515
    %v716 = vpop.f32.mrb[0].mxu0
    %v717 = vadd.f32 %v584, %v716
    %v718 = vpop.f32.mrb[0].mxu0
    %v719 = vpop.f32.mrb[0].mxu0
    %v720 = vadd.f32 %v584, %v719
    %v721 = vpop.f32.mrb[0].mxu0
    %722 = vmatprep.mubr.bf16.mxu0 %v518
    %723 = vmatmul.mubr.bf16.gmra.mrb[0].mxu0 %v517
    %v724 = vpop.f32.mrb[0].mxu0
    %v725 = vadd.f32 %v584, %v724
    %v726 = vpop.f32.mrb[0].mxu0
    %v727 = vpop.f32.mrb[0].mxu0
    %v728 = vadd.f32 %v584, %v727
    %v729 = vpop.f32.mrb[0].mxu0
    %730 = vmatprep.mubr.bf16.mxu0 %v520
    %731 = vmatmul.mubr.bf16.gmra.mrb[0].mxu0 %v519
    %v732 = vpop.f32.mrb[0].mxu0
    %v733 = vadd.f32 %v584, %v732
    %v734 = vpop.f32.mrb[0].mxu0
    %v735 = vpop.f32.mrb[0].mxu0
    %v736 = vadd.f32 %v584, %v735
    %v737 = vpop.f32.mrb[0].mxu0
    %738 = vmatprep.mubr.bf16.mxu0 %v522
    %739 = vmatmul.mubr.bf16.gmra.mrb[0].mxu0 %v521
    %v740 = vpop.f32.mrb[0].mxu0
    %v741 = vadd.f32 %v584, %v740
    %v742 = vpop.f32.mrb[0].mxu0
    %v743 = vpop.f32.mrb[0].mxu0
    %v744 = vadd.f32 %v584, %v743
    %v745 = vpop.f32.mrb[0].mxu0
    %746 = vmatprep.mubr.bf16.mxu0 %v524
    %747 = vmatmul.mubr.bf16.gmra.mrb[0].mxu0 %v523
    %v748 = vpop.f32.mrb[0].mxu0
    %v749 = vadd.f32 %v584, %v748
    %v750 = vpop.f32.mrb[0].mxu0
    %v751 = vpop.f32.mrb[0].mxu0
    %v752 = vadd.f32 %v584, %v751
    %v753 = vpop.f32.mrb[0].mxu0
    %754 = vmatprep.mubr.bf16.mxu0 %v526
    %755 = vmatmul.mubr.bf16.gmra.mrb[0].mxu0 %v525
    %v756 = vpop.f32.mrb[0].mxu0
    %v757 = vadd.f32 %v584, %v756
    %v758 = vpop.f32.mrb[0].mxu0
    %v759 = vpop.f32.mrb[0].mxu0
    %v760 = vadd.f32 %v584, %v759
    %v761 = vpop.f32.mrb[0].mxu0
    %762 = vmatprep.mubr.bf16.mxu0 %v528
    %763 = vmatmul.mubr.bf16.gmra.mrb[0].mxu0 %v527
    %v764 = vpop.f32.mrb[0].mxu0
    %v765 = vadd.f32 %v584, %v764
    %v766 = vpop.f32.mrb[0].mxu0
    %v767 = vpop.f32.mrb[0].mxu0
    %v768 = vadd.f32 %v584, %v767
    %v769 = vpop.f32.mrb[0].mxu0
    %770 = vmatprep.mubr.bf16.mxu0 %v530
    %771 = vmatmul.mubr.bf16.gmra.mrb[0].mxu0 %v529
    %v772 = vpop.f32.mrb[0].mxu0
    %v773 = vadd.f32 %v584, %v772
    %v774 = vpop.f32.mrb[0].mxu0
    %v775 = vpop.f32.mrb[0].mxu0
    %v776 = vadd.f32 %v584, %v775
    %v777 = vpop.f32.mrb[0].mxu0
    %778 = vmatprep.mubr.bf16.mxu0 %v532
    %779 = vmatmul.mubr.bf16.gmra.mrb[0].mxu0 %v531
    %v780 = vpop.f32.mrb[0].mxu0
    %v781 = vadd.f32 %v584, %v780
    %v782 = vpop.f32.mrb[0].mxu0
    %v783 = vpop.f32.mrb[0].mxu0
    %v784 = vadd.f32 %v584, %v783
    %v785 = vpop.f32.mrb[0].mxu0
    %786 = vmatprep.mubr.bf16.mxu0 %v534
    %787 = vmatmul.mubr.bf16.gmra.mrb[0].mxu0 %v533
    %v788 = vpop.f32.mrb[0].mxu0
    %v789 = vadd.f32 %v584, %v788
    %v790 = vpop.f32.mrb[0].mxu0
    %v791 = vpop.f32.mrb[0].mxu0
    %v792 = vadd.f32 %v584, %v791
    %v793 = vpop.f32.mrb[0].mxu0
    %794 = vmatprep.mubr.bf16.mxu0 %v536
    %795 = vmatmul.mubr.bf16.gmra.mrb[0].mxu0 %v535
    %v796 = vpop.f32.mrb[0].mxu0
    %v797 = vadd.f32 %v584, %v796
    %v798 = vpop.f32.mrb[0].mxu0
    %v799 = vpop.f32.mrb[0].mxu0
    %v800 = vadd.f32 %v584, %v799
    %v801 = vpop.f32.mrb[0].mxu0
    %802 = vmatprep.mubr.bf16.mxu0 %v538
    %803 = vmatmul.mubr.bf16.gmra.mrb[0].mxu0 %v537
    %v804 = vpop.f32.mrb[0].mxu0
    %v805 = vadd.f32 %v584, %v804
    %v806 = vpop.f32.mrb[0].mxu0
    %v807 = vpop.f32.mrb[0].mxu0
    %v808 = vadd.f32 %v584, %v807
    %v809 = vpop.f32.mrb[0].mxu0
    %810 = vmatprep.mubr.bf16.mxu0 %v540
    %811 = vmatmul.mubr.bf16.gmra.mrb[0].mxu0 %v539
    %v812 = vpop.f32.mrb[0].mxu0
    %v813 = vadd.f32 %v584, %v812
    %v814 = vpop.f32.mrb[0].mxu0
    %v815 = vpop.f32.mrb[0].mxu0
    %v816 = vadd.f32 %v584, %v815
    %v817 = vpop.f32.mrb[0].mxu0
    %818 = vmatprep.mubr.bf16.mxu0 %v542
    %819 = vmatmul.mubr.bf16.gmra.mrb[0].mxu0 %v541
    %v820 = vpop.f32.mrb[0].mxu0
    %v821 = vadd.f32 %v584, %v820
    %v822 = vpop.f32.mrb[0].mxu0
    %v823 = vpop.f32.mrb[0].mxu0
    %v824 = vadd.f32 %v584, %v823
    %v825 = vpop.f32.mrb[0].mxu0
    %826 = vmatprep.mubr.bf16.mxu0 %v544
    %827 = vmatmul.mubr.bf16.gmra.mrb[0].mxu0 %v543
    %v828 = vpop.f32.mrb[0].mxu0
    %v829 = vadd.f32 %v584, %v828
    %v830 = vpop.f32.mrb[0].mxu0
    %v831 = vpop.f32.mrb[0].mxu0
    %v832 = vadd.f32 %v584, %v831
    %v833 = vpop.f32.mrb[0].mxu0
    %834 = vmatprep.mubr.bf16.mxu0 %v546
    %835 = vmatmul.mubr.bf16.gmra.mrb[0].mxu0 %v545
    %v836 = vpop.f32.mrb[0].mxu0
    %v837 = vadd.f32 %v584, %v836
    %v838 = vpop.f32.mrb[0].mxu0
    %v839 = vpop.f32.mrb[0].mxu0
    %v840 = vadd.f32 %v584, %v839
    %v841 = vpop.f32.mrb[0].mxu0
    %842 = vdwg.mxu0
    %v843 = vtanh.pop %v717
    %v844 = vtanh.pop %v720
    %v845 = vtanh.pop %v725
    %v846 = vtanh.pop %v728
    %v847 = vtanh.pop %v733
    %v848 = vtanh.pop %v736
    %v849 = vtanh.pop %v741
    %v850 = vtanh.pop %v744
    %v851 = vtanh.pop %v749
    %v852 = vtanh.pop %v752
    %v853 = vtanh.pop %v757
    %v854 = vtanh.pop %v760
    %v855 = vtanh.pop %v765
    %v856 = vtanh.pop %v768
    %v857 = vtanh.pop %v773
    %v858 = vtanh.pop %v776
    %v859 = vtanh.pop %v781
    %v860 = vtanh.pop %v784
    %v861 = vtanh.pop %v789
    %v862 = vtanh.pop %v792
    %v863 = vtanh.pop %v797
    %v864 = vtanh.pop %v800
    %v865 = vtanh.pop %v805
    %v866 = vtanh.pop %v808
    %v867 = vtanh.pop %v813
    %v868 = vtanh.pop %v816
    %v869 = vtanh.pop %v821
    %v870 = vtanh.pop %v824
    %v871 = vtanh.pop %v829
    %v872 = vtanh.pop %v832
    %v873 = vtanh.pop %v837
    %v874 = vtanh.pop %v840
    %875 = vst [vmem:[#allocation2] sm:$0xff] %v843
    %876 = vst [vmem:[#allocation2 + $0x8] sm:$0xff] %v844
    %877 = vst [vmem:[#allocation2 + $0x10] sm:$0xff] %v845
    %878 = vst [vmem:[#allocation2 + $0x18] sm:$0xff] %v846
    %879 = vst [vmem:[#allocation2 + $0x20] sm:$0xff] %v847
    %880 = vst [vmem:[#allocation2 + $0x28] sm:$0xff] %v848
    %881 = vst [vmem:[#allocation2 + $0x30] sm:$0xff] %v849
    %882 = vst [vmem:[#allocation2 + $0x38] sm:$0xff] %v850
    %883 = vst [vmem:[#allocation2 + $0x40] sm:$0xff] %v851
    %884 = vst [vmem:[#allocation2 + $0x48] sm:$0xff] %v852
    %885 = vst [vmem:[#allocation2 + $0x50] sm:$0xff] %v853
    %886 = vst [vmem:[#allocation2 + $0x58] sm:$0xff] %v854
    %887 = vst [vmem:[#allocation2 + $0x60] sm:$0xff] %v855
    %888 = vst [vmem:[#allocation2 + $0x68] sm:$0xff] %v856
    %889 = vst [vmem:[#allocation2 + $0x70] sm:$0xff] %v857
    %890 = vst [vmem:[#allocation2 + $0x78] sm:$0xff] %v858
    %891 = vst [vmem:[#allocation2 + $0x80] sm:$0xff] %v859
    %892 = vst [vmem:[#allocation2 + $0x88] sm:$0xff] %v860
    %893 = vst [vmem:[#allocation2 + $0x90] sm:$0xff] %v861
    %894 = vst [vmem:[#allocation2 + $0x98] sm:$0xff] %v862
    %895 = vst [vmem:[#allocation2 + $0xa0] sm:$0xff] %v863
    %896 = vst [vmem:[#allocation2 + $0xa8] sm:$0xff] %v864
    %897 = vst [vmem:[#allocation2 + $0xb0] sm:$0xff] %v865
    %898 = vst [vmem:[#allocation2 + $0xb8] sm:$0xff] %v866
    %899 = vst [vmem:[#allocation2 + $0xc0] sm:$0xff] %v867
    %900 = vst [vmem:[#allocation2 + $0xc8] sm:$0xff] %v868
    %901 = vst [vmem:[#allocation2 + $0xd0] sm:$0xff] %v869
    %902 = vst [vmem:[#allocation2 + $0xd8] sm:$0xff] %v870
    %903 = vst [vmem:[#allocation2 + $0xe0] sm:$0xff] %v871
    %904 = vst [vmem:[#allocation2 + $0xe8] sm:$0xff] %v872
    %905 = vst [vmem:[#allocation2 + $0xf0] sm:$0xff] %v873
    %906 = vst [vmem:[#allocation2 + $0xf8] sm:$0xff] %v874
    // Predicated region
    $region22: #{sequential_forward.1} parent=1 // pred_check
      _
    $region23: #{sequential_forward.1} parent=1 // pred_check_branch
      %908 = sbr.rel (0) target = $region25
    $region24: #{sequential_forward.1} parent=1 // pred_region
      %s910 = ssub.s32 4096, 4096
      %911 = vsyncadd [#allocation3], %s910
      %s912 = sshll.u32 [#allocation2], 4
      %s913 = int_to_ptr.vmem [resolvable:$true] %s912
      %918 = dma.vmem_to_hbm [thread:$0]  %s913, 4096, %s5, [#allocation3], 128, 128, 8
    $region25: #{sequential_forward.1} parent=1 // pred_fallthru
      _
    // Predicated region
    $region26: #{sequential_forward.1} parent=1 // pred_check
      _
    $region27: #{sequential_forward.1} parent=1 // pred_check_branch
      %920 = sbr.rel (0) target = $region29
    $region28: #{sequential_forward.1} parent=1 // pred_region
      %921 = dma.done [#allocation3], 4096
    $region29: #{sequential_forward.1} parent=1 // pred_fallthru
      _
    %922 = vsyncpa [#allocation3], 1

</llo_original>
